<compile_context>
chip_gen: v5e
topology: v5e:2x2
jax: 0.10.0
libtpu: 0.0.40
codegen_flags: <defaults>
</compile_context>

<pallas_src>
import functools

import jax
import jax.numpy as jnp
from jax.experimental import pallas as pl
from jax.experimental.pallas import tpu as pltpu

LAMBDA = 10.0


def _round_up(x, m):
    return (x + m - 1) // m * m


# ------------------------------ Pallas kernel --------------------------------

def _wgan_fused_kernel(xh_ref, wm_ref, w1_ref, b1_ref, w2_ref, gram_ref,
                       act_ref, q_ref, *, gp_start_block):
    """One (tb, tt) tile of the stacked [real | fake | interp] batch.

    xh_ref  : (tb, tt, Dxh)  concatenated data + hiddens
    wm_ref  : (tb, tt, 1)    mask/len pooling weights (0 on padding)
    w1_ref  : (Dxh, H)       stacked first-layer weights
    b1_ref  : (1, H)
    w2_ref  : (1, H)
    gram_ref: (H, H)         W1^T @ W1
    act_ref : (tb, H) out    sum_t wm   * tanh(pre)        (resident accumulator)
    q_ref   : (tb, H) out    sum_t wm^2 * g * (g @ Gram)   (resident accumulator)
    """
    bi = pl.program_id(0)
    ti = pl.program_id(1)

    @pl.when(ti == 0)
    def _init():
        act_ref[...] = jnp.zeros_like(act_ref)
        q_ref[...] = jnp.zeros_like(q_ref)

    tb, tt, dxh = xh_ref.shape
    h = w1_ref.shape[1]

    xh = xh_ref[...].reshape(tb * tt, dxh)
    pre = (jnp.dot(xh, w1_ref[...], preferred_element_type=jnp.float32)
           + b1_ref[...])                                        # (tb*tt, H)
    a = jnp.tanh(pre)
    wm = wm_ref[...]                                             # (tb, tt, 1)

    # masked-mean pooling over the T (sublane) axis -> lane-dense (tb, H)
    act_ref[...] += jnp.sum(a.reshape(tb, tt, h) * wm, axis=1)

    # gradient-penalty branch: only for blocks of the interpolated stream
    @pl.when(bi >= gp_start_block)
    def _gp():
        g = (1.0 - a * a) * w2_ref[...]                          # (tb*tt, H)
        gm = jnp.dot(g, gram_ref[...], preferred_element_type=jnp.float32)
        q = (g * gm).reshape(tb, tt, h)
        q_ref[...] += jnp.sum(q * (wm * wm), axis=1)             # (tb, H)


# -------------------------------- wrapper -------------------------------------

def wgan_gp_loss(real_data, real_hiddens, fake_data, fake_hiddens, lens,
                 params, alpha_key, lambda_=LAMBDA):
    w1x, w1h, b1, w2r = params
    B, T, Dx = real_data.shape
    Dh = real_hiddens.shape[-1]
    Dxh = Dx + Dh
    H = w1x.shape[1]

    # ---- tile sizes: pad per-stream batch and T so blocks are layout-friendly
    tb = 8                                   # f32 sublane multiple
    Bp = _round_up(B, tb)
    tt = 128 if T > 128 else _round_up(T, 8)
    Tp = _round_up(T, tt)

    # ---- interpolates (alpha ~ U[0,1), shape (B,1,1)) ------------------------
    alpha = jax.random.uniform(alpha_key, (B, 1, 1), jnp.float32)
    inter_data = alpha * real_data + (1.0 - alpha) * fake_data
    inter_hiddens = alpha * real_hiddens + (1.0 - alpha) * fake_hiddens

    # ---- pooling weights: mask/len (guarded), zero on padded rows/timesteps --
    lens_safe = jnp.maximum(lens, 1).astype(jnp.float32)
    mask = (jnp.arange(T)[None, :] < lens[:, None]).astype(jnp.float32)   # (B,T)
    wm = mask / lens_safe[:, None]
    wm = jnp.pad(wm, ((0, Bp - B), (0, Tp - T)))
    wm3 = jnp.tile(wm, (3, 1)).reshape(3 * Bp, Tp, 1)

    # ---- stacked inputs: [real | fake | interp] along batch ------------------
    def prep(x, hdn):
        xh = jnp.concatenate([x, hdn], axis=-1)                           # (B,T,Dxh)
        return jnp.pad(xh, ((0, Bp - B), (0, Tp - T), (0, 0)))

    xh_all = jnp.concatenate([prep(real_data, real_hiddens),
                              prep(fake_data, fake_hiddens),
                              prep(inter_data, inter_hiddens)], axis=0)   # (3Bp,Tp,Dxh)

    # ---- stacked / precomputed weights (no transposes shipped to the kernel) -
    w1 = jnp.concatenate([w1x, w1h], axis=0)                              # (Dxh,H)
    gram = jnp.dot(w1.T, w1)                                              # (H,H)

    nb = 3 * Bp // tb
    nt = Tp // tt
    gp_start_block = 2 * (Bp // tb)

    kernel = functools.partial(_wgan_fused_kernel, gp_start_block=gp_start_block)

    pooled_act, pooled_q = pl.pallas_call(
        kernel,
        out_shape=(jax.ShapeDtypeStruct((3 * Bp, H), jnp.float32),
                   jax.ShapeDtypeStruct((3 * Bp, H), jnp.float32)),
        grid_spec=pltpu.PrefetchScalarGridSpec(
            num_scalar_prefetch=0,
            grid=(nb, nt),
            in_specs=[
                pl.BlockSpec((tb, tt, Dxh), lambda bi, ti: (bi, ti, 0)),
                pl.BlockSpec((tb, tt, 1), lambda bi, ti: (bi, ti, 0)),
                pl.BlockSpec((Dxh, H), lambda bi, ti: (0, 0)),
                pl.BlockSpec((1, H), lambda bi, ti: (0, 0)),
                pl.BlockSpec((1, H), lambda bi, ti: (0, 0)),
                pl.BlockSpec((H, H), lambda bi, ti: (0, 0)),
            ],
            out_specs=[
                pl.BlockSpec((tb, H), lambda bi, ti: (bi, 0)),
                pl.BlockSpec((tb, H), lambda bi, ti: (bi, 0)),
            ],
        ),
        compiler_params=pltpu.CompilerParams(
            dimension_semantics=("parallel", "arbitrary")),
    )(xh_all, wm3, w1, b1, w2r, gram)

    # ---- tiny epilogues in JAX (lane-dense slabs -> scalars) -----------------
    scores = jnp.sum(pooled_act * w2r, axis=-1)              # (3Bp,)
    d_real = scores[:B]
    d_fake = scores[Bp:Bp + B]

    gsq = jnp.sum(pooled_q[2 * Bp:2 * Bp + B], axis=-1)      # (B,)
    grad_norm = jnp.sqrt(gsq + 1e-12)                        # eps: safe d/dx at 0
    gradient_penalty = jnp.mean((grad_norm - 1.0) ** 2) * lambda_

    wasserstein_distance = jnp.mean(d_real) - jnp.mean(d_fake)
    d_loss = -wasserstein_distance + gradient_penalty
    return d_loss, wasserstein_distance


# TODO(synk): parameter gradients (training the discriminator through this loss)
# would need a custom_vjp around the pallas_call; only the forward is implemented.


# --------------------------------- main ---------------------------------------

if __name__ == "__main__":
    B, T, Dx, Dh, H = 2, 8, 16, 32, 32

    key = jax.random.PRNGKey(0)
    k0, k1, k2, k3, k_alpha = jax.random.split(key, 5)
    real_data = jax.random.normal(k0, (B, T, Dx), jnp.float32)
    real_hiddens = jax.random.normal(k1, (B, T, Dh), jnp.float32)
    fake_data = jax.random.normal(k2, (B, T, Dx), jnp.float32)
    fake_hiddens = jax.random.normal(k3, (B, T, Dh), jnp.float32)
    lens = jnp.array([8, 5], jnp.int32)

    # deterministic synthetic discriminator parameters
    pkey = jax.random.PRNGKey(42)
    p0, p1, p2 = jax.random.split(pkey, 3)
    w1x = 0.1 * jax.random.normal(p0, (Dx, H), jnp.float32)
    w1h = 0.1 * jax.random.normal(p1, (Dh, H), jnp.float32)
    b1 = jnp.zeros((1, H), jnp.float32)
    w2r = 0.1 * jax.random.normal(p2, (1, H), jnp.float32)

    d_loss, wd = wgan_gp_loss(real_data, real_hiddens, fake_data, fake_hiddens,
                              lens, (w1x, w1h, b1, w2r), k_alpha)
    jax.block_until_ready((d_loss, wd))
    print("KERNEL_OK")
</pallas_src>

<mosaic_0001>
module attributes {stable_mosaic.version = 11 : i64} {
  func.func @_wgan_fused_kernel(%arg0: i32, %arg1: i32, %arg2: memref<8x8x48xf32, #tpu.memory_space<vmem>>, %arg3: memref<8x8x1xf32, #tpu.memory_space<vmem>>, %arg4: memref<48x32xf32, #tpu.memory_space<vmem>>, %arg5: memref<1x32xf32, #tpu.memory_space<vmem>>, %arg6: memref<1x32xf32, #tpu.memory_space<vmem>>, %arg7: memref<32x32xf32, #tpu.memory_space<vmem>>, %arg8: memref<8x32xf32, #tpu.memory_space<vmem>>, %arg9: memref<8x32xf32, #tpu.memory_space<vmem>>) attributes {dimension_semantics = [#tpu.dimension_semantics<parallel>, #tpu.dimension_semantics<arbitrary>], iteration_bounds = array<i64: 3, 1>, scalar_prefetch = 0 : i64, scratch_operands = 0 : i64, tpu.core_type = #tpu.core_type<tc>, window_params = [{transform_indices = @transform_0, window_bounds = array<i64: 8, 8, 48>}, {transform_indices = @transform_1, window_bounds = array<i64: 8, 8, 1>}, {pipeline_mode = #tpu.pipeline_mode<synchronous>, transform_indices = @transform_2, window_bounds = array<i64: 48, 32>}, {pipeline_mode = #tpu.pipeline_mode<synchronous>, transform_indices = @transform_3, window_bounds = array<i64: 1, 32>}, {pipeline_mode = #tpu.pipeline_mode<synchronous>, transform_indices = @transform_4, window_bounds = array<i64: 1, 32>}, {pipeline_mode = #tpu.pipeline_mode<synchronous>, transform_indices = @transform_5, window_bounds = array<i64: 32, 32>}, {transform_indices = @transform_6, window_bounds = array<i64: 8, 32>}, {transform_indices = @transform_7, window_bounds = array<i64: 8, 32>}]} {
    %c0_i32 = arith.constant 0 : i32
    %0 = arith.cmpi eq, %arg1, %c0_i32 : i32
    %1 = arith.extui %0 : i1 to i32
    %c0_i32_0 = arith.constant 0 : i32
    %2 = arith.cmpi ne, %1, %c0_i32_0 : i32
    scf.if %2 {
      %cst_16 = arith.constant 0.000000e+00 : f32
      %22 = vector.broadcast %cst_16 : f32 to vector<8x32xf32>
      %c0_17 = arith.constant 0 : index
      %c0_18 = arith.constant 0 : index
      %23 = vector.load %arg8[%c0_17, %c0_18] : memref<8x32xf32, #tpu.memory_space<vmem>>, vector<8x32xf32>
      tpu.vector_store %arg8[%c0_17, %c0_18], %22 {strides = array<i32>} : memref<8x32xf32, #tpu.memory_space<vmem>>, vector<8x32xf32>,
      %cst_19 = arith.constant 0.000000e+00 : f32
      %24 = vector.broadcast %cst_19 : f32 to vector<8x32xf32>
      %c0_20 = arith.constant 0 : index
      %c0_21 = arith.constant 0 : index
      %25 = vector.load %arg9[%c0_20, %c0_21] : memref<8x32xf32, #tpu.memory_space<vmem>>, vector<8x32xf32>
      tpu.vector_store %arg9[%c0_20, %c0_21], %24 {strides = array<i32>} : memref<8x32xf32, #tpu.memory_space<vmem>>, vector<8x32xf32>,
    } else {
    }
    %c0 = arith.constant 0 : index
    %c0_1 = arith.constant 0 : index
    %c0_2 = arith.constant 0 : index
    %3 = vector.load %arg2[%c0, %c0_1, %c0_2] : memref<8x8x48xf32, #tpu.memory_space<vmem>>, vector<8x8x48xf32>
    %4 = vector.shape_cast %3 : vector<8x8x48xf32> to vector<64x48xf32>
    %c0_3 = arith.constant 0 : index
    %c0_4 = arith.constant 0 : index
    %5 = vector.load %arg4[%c0_3, %c0_4] : memref<48x32xf32, #tpu.memory_space<vmem>>, vector<48x32xf32>
    %cst = arith.constant dense<0.000000e+00> : vector<64x32xf32>
    %6 = tpu.matmul %4, %5, %cst {dimension_numbers = #tpu.dot_dimension_numbers<[1], [0], [0], [1], [0, 0, 1, 1], [], []>} : vector<64x48xf32>, vector<48x32xf32>, vector<64x32xf32> -> vector<64x32xf32>
    %c0_5 = arith.constant 0 : index
    %c0_6 = arith.constant 0 : index
    %7 = vector.load %arg5[%c0_5, %c0_6] : memref<1x32xf32, #tpu.memory_space<vmem>>, vector<1x32xf32>
    %8 = vector.broadcast %7 : vector<1x32xf32> to vector<64x32xf32>
    %9 = arith.addf %6, %8 : vector<64x32xf32>
    %10 = math.tanh %9 : vector<64x32xf32>
    %c0_7 = arith.constant 0 : index
    %c0_8 = arith.constant 0 : index
    %c0_9 = arith.constant 0 : index
    %11 = vector.load %arg3[%c0_7, %c0_8, %c0_9] : memref<8x8x1xf32, #tpu.memory_space<vmem>>, vector<8x8x1xf32>
    %c0_10 = arith.constant 0 : index
    %c0_11 = arith.constant 0 : index
    %12 = vector.load %arg8[%c0_10, %c0_11] : memref<8x32xf32, #tpu.memory_space<vmem>>, vector<8x32xf32>
    %13 = vector.shape_cast %10 : vector<64x32xf32> to vector<8x8x32xf32>
    %14 = vector.broadcast %11 : vector<8x8x1xf32> to vector<8x8x32xf32>
    %15 = arith.mulf %13, %14 : vector<8x8x32xf32>
    %cst_12 = arith.constant dense<0.000000e+00> : vector<8x32xf32>
    %16 = vector.multi_reduction <add>, %15, %cst_12 [1] : vector<8x8x32xf32> to vector<8x32xf32>
    %17 = arith.addf %12, %16 : vector<8x32xf32>
    %c0_13 = arith.constant 0 : index
    %c0_14 = arith.constant 0 : index
    %18 = vector.load %arg8[%c0_13, %c0_14] : memref<8x32xf32, #tpu.memory_space<vmem>>, vector<8x32xf32>
    tpu.vector_store %arg8[%c0_13, %c0_14], %17 {strides = array<i32>} : memref<8x32xf32, #tpu.memory_space<vmem>>, vector<8x32xf32>,
    %c2_i32 = arith.constant 2 : i32
    %19 = arith.cmpi sge, %arg0, %c2_i32 : i32
    %20 = arith.extui %19 : i1 to i32
    %c0_i32_15 = arith.constant 0 : i32
    %21 = arith.cmpi ne, %20, %c0_i32_15 : i32
    scf.if %21 {
      %22 = arith.mulf %10, %10 : vector<64x32xf32>
      %cst_16 = arith.constant 1.000000e+00 : f32
      %23 = vector.broadcast %cst_16 : f32 to vector<64x32xf32>
      %24 = arith.subf %23, %22 : vector<64x32xf32>
      %c0_17 = arith.constant 0 : index
      %c0_18 = arith.constant 0 : index
      %25 = vector.load %arg6[%c0_17, %c0_18] : memref<1x32xf32, #tpu.memory_space<vmem>>, vector<1x32xf32>
      %26 = vector.broadcast %25 : vector<1x32xf32> to vector<64x32xf32>
      %27 = arith.mulf %24, %26 : vector<64x32xf32>
      %c0_19 = arith.constant 0 : index
      %c0_20 = arith.constant 0 : index
      %28 = vector.load %arg7[%c0_19, %c0_20] : memref<32x32xf32, #tpu.memory_space<vmem>>, vector<32x32xf32>
      %cst_21 = arith.constant dense<0.000000e+00> : vector<64x32xf32>
      %29 = tpu.matmul %27, %28, %cst_21 {dimension_numbers = #tpu.dot_dimension_numbers<[1], [0], [0], [1], [0, 0, 1, 1], [], []>} : vector<64x32xf32>, vector<32x32xf32>, vector<64x32xf32> -> vector<64x32xf32>
      %30 = arith.mulf %27, %29 : vector<64x32xf32>
      %31 = vector.shape_cast %30 : vector<64x32xf32> to vector<8x8x32xf32>
      %c0_22 = arith.constant 0 : index
      %c0_23 = arith.constant 0 : index
      %32 = vector.load %arg9[%c0_22, %c0_23] : memref<8x32xf32, #tpu.memory_space<vmem>>, vector<8x32xf32>
      %33 = arith.mulf %11, %11 : vector<8x8x1xf32>
      %34 = vector.broadcast %33 : vector<8x8x1xf32> to vector<8x8x32xf32>
      %35 = arith.mulf %31, %34 : vector<8x8x32xf32>
      %cst_24 = arith.constant dense<0.000000e+00> : vector<8x32xf32>
      %36 = vector.multi_reduction <add>, %35, %cst_24 [1] : vector<8x8x32xf32> to vector<8x32xf32>
      %37 = arith.addf %32, %36 : vector<8x32xf32>
      %c0_25 = arith.constant 0 : index
      %c0_26 = arith.constant 0 : index
      %38 = vector.load %arg9[%c0_25, %c0_26] : memref<8x32xf32, #tpu.memory_space<vmem>>, vector<8x32xf32>
      tpu.vector_store %arg9[%c0_25, %c0_26], %37 {strides = array<i32>} : memref<8x32xf32, #tpu.memory_space<vmem>>, vector<8x32xf32>,
    } else {
    }
    return
  }
  func.func @transform_0(%arg0: i32, %arg1: i32) -> (i32, i32, i32) {
    %c0_i32 = arith.constant 0 : i32
    %c0_i32_0 = arith.constant 0 : i32
    return %arg0, %arg1, %c0_i32 : i32, i32, i32
  }
  func.func @transform_1(%arg0: i32, %arg1: i32) -> (i32, i32, i32) {
    %c0_i32 = arith.constant 0 : i32
    %c0_i32_0 = arith.constant 0 : i32
    return %arg0, %arg1, %c0_i32 : i32, i32, i32
  }
  func.func @transform_2(%arg0: i32, %arg1: i32) -> (i32, i32) {
    %c0_i32 = arith.constant 0 : i32
    %c0_i32_0 = arith.constant 0 : i32
    %c0_i32_1 = arith.constant 0 : i32
    return %c0_i32, %c0_i32_0 : i32, i32
  }
  func.func @transform_3(%arg0: i32, %arg1: i32) -> (i32, i32) {
    %c0_i32 = arith.constant 0 : i32
    %c0_i32_0 = arith.constant 0 : i32
    %c0_i32_1 = arith.constant 0 : i32
    return %c0_i32, %c0_i32_0 : i32, i32
  }
  func.func @transform_4(%arg0: i32, %arg1: i32) -> (i32, i32) {
    %c0_i32 = arith.constant 0 : i32
    %c0_i32_0 = arith.constant 0 : i32
    %c0_i32_1 = arith.constant 0 : i32
    return %c0_i32, %c0_i32_0 : i32, i32
  }
  func.func @transform_5(%arg0: i32, %arg1: i32) -> (i32, i32) {
    %c0_i32 = arith.constant 0 : i32
    %c0_i32_0 = arith.constant 0 : i32
    %c0_i32_1 = arith.constant 0 : i32
    return %c0_i32, %c0_i32_0 : i32, i32
  }
  func.func @transform_6(%arg0: i32, %arg1: i32) -> (i32, i32) {
    %c0_i32 = arith.constant 0 : i32
    %c0_i32_0 = arith.constant 0 : i32
    return %arg0, %c0_i32 : i32, i32
  }
  func.func @transform_7(%arg0: i32, %arg1: i32) -> (i32, i32) {
    %c0_i32 = arith.constant 0 : i32
    %c0_i32_0 = arith.constant 0 : i32
    return %arg0, %c0_i32 : i32, i32
  }
}

</mosaic_0001>

<llo_original>
// kernel: tpu_custom_call.1
$region0: #{tpu_custom_call.1}
  #allocation0 [shape = 'u32[]', space=smem, size = 0x4, offset = 0x4, fixed_abs, tag = 'smem constant byte address 0x4 - core index']
  #allocation1 [shape = 'u32[72,128]{1,0:T(1,128)}', space=vmem, size = 0x9000, scoped, tag = 'internal scratch']
  %s0 = inlined_call_operand.vmem [shape: f32[24,8,48], index: 0, kind: input, shape index: {}]
  %s1 = inlined_call_operand.vmem [shape: f32[24,8,1], index: 1, kind: input, shape index: {}]
  %s2 = inlined_call_operand.vmem [shape: f32[48,32], index: 2, kind: input, shape index: {}]
  %s3 = inlined_call_operand.vmem [shape: f32[1,32], index: 3, kind: input, shape index: {}]
  %s4 = inlined_call_operand.vmem [shape: f32[1,32], index: 4, kind: input, shape index: {}]
  %s5 = inlined_call_operand.vmem [shape: f32[32,32], index: 5, kind: input, shape index: {}]
  %s6 = inlined_call_operand.hbm [shape: f32[24,32], index: 6, kind: output, shape index: {0}]
  %s7 = inlined_call_operand.hbm [shape: f32[24,32], index: 7, kind: output, shape index: {1}]
  %8 = xla_tuple %s6, %s7
  %s9 = sld [smem:[#allocation0]]
  $region73: #{tpu_custom_call.1} parent=0
    _
  %s11 = ssub.s32 1, %s9
  %s12 = scalar_select 0, %s11, %s9
  $region1: #{tpu_custom_call.1} parent=0
    #allocation2 [shape = 'u8[8192]{0}', space=vmem, size = 0x2000, scoped, tag = 'output window, operand 0']
    #allocation3 [shape = 's32[2]{0}', space=sflag, size = 0x8, scoped, tag = 'scoped memory for tpu_custom_call.1']
    #allocation4 [shape = 'u8[8192]{0}', space=vmem, size = 0x2000, scoped, tag = 'output window, operand 1']
    #allocation5 [shape = 's32[2]{0}', space=sflag, size = 0x8, scoped, tag = 'scoped memory for tpu_custom_call.1']
    %13 = vsyncpa [#allocation3], 0
    %s14 = scalar_lea.sflag [#allocation3], 1
    %15 = vsyncpa %s14, 0
    %16 = vsyncpa [#allocation5], 0
    %s17 = scalar_lea.sflag [#allocation5], 1
    %18 = vsyncpa %s17, 0
    loop: start=0, step=1, limit=5
    $region2: #{tpu_custom_call.1} parent=1 // loop_pre_header
      _
    $region3: #{tpu_custom_call.1} parent=1 // loop_header
      %s20 = sphi 0, %s24
      %p21 = scmp.ge.s32.totalorder %s20, 5
      %s27 = sphi 0, %s39
      %s28 = sphi 0, %s35
      %s29 = sphi 0, %s27
      %s30 = sphi 0, %s28
      %s31 = sphi 0, %s29
      %s32 = sphi 0, %s30
      %s44 = sphi 0, %s46
      %s47 = sphi 0, %s44
      %s48 = sphi 0, %s47
      %s64 = sphi 0, %s48
      %s72 = sphi 0, %s74
      %s75 = sphi 0, %s72
      %s76 = sphi 0, %s75
      %s92 = sphi 0, %s76
      %s96 = sphi 0, %s96
      %s98 = sphi 0, %s96
      %s99 = sphi 0, %s98
      %s113 = sphi 0, %s99
      %s117 = sphi 0, %s117
      %s119 = sphi 0, %s117
      %s120 = sphi 0, %s119
      %s134 = sphi 0, %s120
      %s138 = sphi 0, %s138
      %s140 = sphi 0, %s138
      %s141 = sphi 0, %s140
      %s155 = sphi 0, %s141
      %s159 = sphi 0, %s159
      %s161 = sphi 0, %s159
      %s162 = sphi 0, %s161
      %s176 = sphi 0, %s162
      %s182 = sphi 0, %s184
      %s185 = sphi 0, %s182
      %s186 = sphi 0, %s185
      %s202 = sphi 0, %s186
      %s208 = sphi 0, %s210
      %s211 = sphi 0, %s208
      %s212 = sphi 0, %s211
      %s228 = sphi 0, %s212
    $region4: #{tpu_custom_call.1} parent=1 // loop_header_branch
      %23 = sbr.rel (%p21) target = $region8
    $region5: #{tpu_custom_call.1} parent=1 // loop_body
      %s25 = ssub.s32 %s20, 1
      %s26 = ssub.s32 %s20, 2
      %s33 = sadd.s32 1, %s28
      %p34 = scmp.ge.s32.totalorder %s33, 1
      %s35 = scalar_select %p34, 0, %s33
      %s36 = sadd.s32 1, %s27
      %s37 = scalar_select %p34, %s36, %s27
      %p38 = scmp.ge.s32.totalorder %s37, 3
      %s39 = scalar_select %p38, 0, %s37
      %s40 = ssub.s32 %s27, %s39
      %s41 = ssub.s32 %s28, %s35
      %s42 = sor.u32 %s40, %s41
      %p43 = scmp.eq.s32.totalorder %s42, 0
      %s45 = sadd.s32 %s44, 1
      %s46 = scalar_select %p43, %s44, %s45
      %p49 = pneg %p43
      %p50 = scmp.eq.s32.totalorder %s20, 2
      %p51 = por %p49, %p50
      %p52 = scmp.ne.s32.totalorder %s44, %s47
      %p53 = scmp.eq.s32.totalorder %s20, 0
      %p54 = por %p52, %p53
      %p55 = scmp.ne.s32.totalorder %s44, %s47
      %p56 = scmp.eq.s32.totalorder %s25, 2
      %p57 = por %p55, %p56
      %p58 = scmp.ne.s32.totalorder %s47, %s48
      %p59 = scmp.eq.s32.totalorder %s25, 0
      %p60 = por %p58, %p59
      %p61 = scmp.ne.s32.totalorder %s47, %s48
      %p62 = scmp.eq.s32.totalorder %s26, 2
      %p63 = por %p61, %p62
      %p65 = scmp.ne.s32.totalorder %s48, %s64
      %p66 = scmp.eq.s32.totalorder %s26, 0
      %p67 = por %p65, %p66
      %s68 = ssub.s32 %s27, %s39
      %s69 = ssub.s32 %s28, %s35
      %s70 = sor.u32 %s68, %s69
      %p71 = scmp.eq.s32.totalorder %s70, 0
      %s73 = sadd.s32 %s72, 1
      %s74 = scalar_select %p71, %s72, %s73
      %p77 = pneg %p71
      %p78 = scmp.eq.s32.totalorder %s20, 2
      %p79 = por %p77, %p78
      %p80 = scmp.ne.s32.totalorder %s72, %s75
      %p81 = scmp.eq.s32.totalorder %s20, 0
      %p82 = por %p80, %p81
      %p83 = scmp.ne.s32.totalorder %s72, %s75
      %p84 = scmp.eq.s32.totalorder %s25, 2
      %p85 = por %p83, %p84
      %p86 = scmp.ne.s32.totalorder %s75, %s76
      %p87 = scmp.eq.s32.totalorder %s25, 0
      %p88 = por %p86, %p87
      %p89 = scmp.ne.s32.totalorder %s75, %s76
      %p90 = scmp.eq.s32.totalorder %s26, 2
      %p91 = por %p89, %p90
      %p93 = scmp.ne.s32.totalorder %s76, %s92
      %p94 = scmp.eq.s32.totalorder %s26, 0
      %p95 = por %p93, %p94
      %s97 = sadd.s32 %s96, 1
      %p100 = scmp.eq.s32.totalorder %s20, 2
      %p101 = scmp.ne.s32.totalorder %s96, %s98
      %p102 = scmp.eq.s32.totalorder %s20, 0
      %p103 = por %p101, %p102
      %p104 = scmp.ne.s32.totalorder %s96, %s98
      %p105 = scmp.eq.s32.totalorder %s25, 2
      %p106 = por %p104, %p105
      %p107 = scmp.ne.s32.totalorder %s98, %s99
      %p108 = scmp.eq.s32.totalorder %s25, 0
      %p109 = por %p107, %p108
      %p110 = scmp.ne.s32.totalorder %s98, %s99
      %p111 = scmp.eq.s32.totalorder %s26, 2
      %p112 = por %p110, %p111
      %p114 = scmp.ne.s32.totalorder %s99, %s113
      %p115 = scmp.eq.s32.totalorder %s26, 0
      %p116 = por %p114, %p115
      %s118 = sadd.s32 %s117, 1
      %p121 = scmp.eq.s32.totalorder %s20, 2
      %p122 = scmp.ne.s32.totalorder %s117, %s119
      %p123 = scmp.eq.s32.totalorder %s20, 0
      %p124 = por %p122, %p123
      %p125 = scmp.ne.s32.totalorder %s117, %s119
      %p126 = scmp.eq.s32.totalorder %s25, 2
      %p127 = por %p125, %p126
      %p128 = scmp.ne.s32.totalorder %s119, %s120
      %p129 = scmp.eq.s32.totalorder %s25, 0
      %p130 = por %p128, %p129
      %p131 = scmp.ne.s32.totalorder %s119, %s120
      %p132 = scmp.eq.s32.totalorder %s26, 2
      %p133 = por %p131, %p132
      %p135 = scmp.ne.s32.totalorder %s120, %s134
      %p136 = scmp.eq.s32.totalorder %s26, 0
      %p137 = por %p135, %p136
      %s139 = sadd.s32 %s138, 1
      %p142 = scmp.eq.s32.totalorder %s20, 2
      %p143 = scmp.ne.s32.totalorder %s138, %s140
      %p144 = scmp.eq.s32.totalorder %s20, 0
      %p145 = por %p143, %p144
      %p146 = scmp.ne.s32.totalorder %s138, %s140
      %p147 = scmp.eq.s32.totalorder %s25, 2
      %p148 = por %p146, %p147
      %p149 = scmp.ne.s32.totalorder %s140, %s141
      %p150 = scmp.eq.s32.totalorder %s25, 0
      %p151 = por %p149, %p150
      %p152 = scmp.ne.s32.totalorder %s140, %s141
      %p153 = scmp.eq.s32.totalorder %s26, 2
      %p154 = por %p152, %p153
      %p156 = scmp.ne.s32.totalorder %s141, %s155
      %p157 = scmp.eq.s32.totalorder %s26, 0
      %p158 = por %p156, %p157
      %s160 = sadd.s32 %s159, 1
      %p163 = scmp.eq.s32.totalorder %s20, 2
      %p164 = scmp.ne.s32.totalorder %s159, %s161
      %p165 = scmp.eq.s32.totalorder %s20, 0
      %p166 = por %p164, %p165
      %p167 = scmp.ne.s32.totalorder %s159, %s161
      %p168 = scmp.eq.s32.totalorder %s25, 2
      %p169 = por %p167, %p168
      %p170 = scmp.ne.s32.totalorder %s161, %s162
      %p171 = scmp.eq.s32.totalorder %s25, 0
      %p172 = por %p170, %p171
      %p173 = scmp.ne.s32.totalorder %s161, %s162
      %p174 = scmp.eq.s32.totalorder %s26, 2
      %p175 = por %p173, %p174
      %p177 = scmp.ne.s32.totalorder %s162, %s176
      %p178 = scmp.eq.s32.totalorder %s26, 0
      %p179 = por %p177, %p178
      %s180 = ssub.s32 %s27, %s39
      %p181 = scmp.eq.s32.totalorder %s180, 0
      %s183 = sadd.s32 %s182, 1
      %s184 = scalar_select %p181, %s182, %s183
      %p187 = pneg %p181
      %p188 = scmp.eq.s32.totalorder %s20, 2
      %p189 = por %p187, %p188
      %p190 = scmp.ne.s32.totalorder %s182, %s185
      %p191 = scmp.eq.s32.totalorder %s20, 0
      %p192 = por %p190, %p191
      %p193 = scmp.ne.s32.totalorder %s182, %s185
      %p194 = scmp.eq.s32.totalorder %s25, 2
      %p195 = por %p193, %p194
      %p196 = scmp.ne.s32.totalorder %s185, %s186
      %p197 = scmp.eq.s32.totalorder %s25, 0
      %p198 = por %p196, %p197
      %p199 = scmp.ne.s32.totalorder %s185, %s186
      %p200 = scmp.eq.s32.totalorder %s26, 2
      %p201 = por %p199, %p200
      %p203 = scmp.ne.s32.totalorder %s186, %s202
      %p204 = scmp.eq.s32.totalorder %s26, 0
      %p205 = por %p203, %p204
      %s206 = ssub.s32 %s27, %s39
      %p207 = scmp.eq.s32.totalorder %s206, 0
      %s209 = sadd.s32 %s208, 1
      %s210 = scalar_select %p207, %s208, %s209
      %p213 = pneg %p207
      %p214 = scmp.eq.s32.totalorder %s20, 2
      %p215 = por %p213, %p214
      %p216 = scmp.ne.s32.totalorder %s208, %s211
      %p217 = scmp.eq.s32.totalorder %s20, 0
      %p218 = por %p216, %p217
      %p219 = scmp.ne.s32.totalorder %s208, %s211
      %p220 = scmp.eq.s32.totalorder %s25, 2
      %p221 = por %p219, %p220
      %p222 = scmp.ne.s32.totalorder %s211, %s212
      %p223 = scmp.eq.s32.totalorder %s25, 0
      %p224 = por %p222, %p223
      %p225 = scmp.ne.s32.totalorder %s211, %s212
      %p226 = scmp.eq.s32.totalorder %s26, 2
      %p227 = por %p225, %p226
      %p229 = scmp.ne.s32.totalorder %s212, %s228
      %p230 = scmp.eq.s32.totalorder %s26, 0
      %p231 = por %p229, %p230
      %p232 = scmp.le.s32.totalorder 1, %s20
      %p233 = scmp.lt.s32.totalorder %s20, 4
      %p234 = pnand %p232, %p233
      %p235 = pneg %p234
      // Predicated region
      $region9: #{tpu_custom_call.1} parent=5 // pred_check
        _
      $region10: #{tpu_custom_call.1} parent=5 // pred_check_branch
        %237 = sbr.rel (%p234) target = $region12
      $region11: #{tpu_custom_call.1} parent=5 // pred_region
        %s238 = ssub.s32 %s20, 1
        // Predicated region
        $region13: #{tpu_custom_call.1} parent=11 // pred_check
          %p239 = pneg %p109
        $region14: #{tpu_custom_call.1} parent=11 // pred_check_branch
          %241 = sbr.rel (%p239) target = $region16
        $region15: #{tpu_custom_call.1} parent=11 // pred_region
          _
        $region16: #{tpu_custom_call.1} parent=11 // pred_fallthru
          _
        // Predicated region
        $region17: #{tpu_custom_call.1} parent=11 // pred_check
          %p242 = pneg %p130
        $region18: #{tpu_custom_call.1} parent=11 // pred_check_branch
          %244 = sbr.rel (%p242) target = $region20
        $region19: #{tpu_custom_call.1} parent=11 // pred_region
          _
        $region20: #{tpu_custom_call.1} parent=11 // pred_fallthru
          _
        // Predicated region
        $region21: #{tpu_custom_call.1} parent=11 // pred_check
          %p245 = pneg %p151
        $region22: #{tpu_custom_call.1} parent=11 // pred_check_branch
          %247 = sbr.rel (%p245) target = $region24
        $region23: #{tpu_custom_call.1} parent=11 // pred_region
          _
        $region24: #{tpu_custom_call.1} parent=11 // pred_fallthru
          _
        // Predicated region
        $region25: #{tpu_custom_call.1} parent=11 // pred_check
          %p248 = pneg %p172
        $region26: #{tpu_custom_call.1} parent=11 // pred_check_branch
          %250 = sbr.rel (%p248) target = $region28
        $region27: #{tpu_custom_call.1} parent=11 // pred_region
          _
        $region28: #{tpu_custom_call.1} parent=11 // pred_fallthru
          _
      $region12: #{tpu_custom_call.1} parent=5 // pred_fallthru
        _
      %p251 = scmp.lt.s32.totalorder %s20, 3
      // Predicated region
      $region29: #{tpu_custom_call.1} parent=5 // pred_check
        %p252 = pneg %p251
      $region30: #{tpu_custom_call.1} parent=5 // pred_check_branch
        %254 = sbr.rel (%p252) target = $region32
      $region31: #{tpu_custom_call.1} parent=5 // pred_region
        // Predicated region
        $region33: #{tpu_custom_call.1} parent=31 // pred_check
          %p255 = pneg %p54
        $region34: #{tpu_custom_call.1} parent=31 // pred_check_branch
          %257 = sbr.rel (%p255) target = $region36
        $region35: #{tpu_custom_call.1} parent=31 // pred_region
          %s258 = smul.u32 8, %s27
          %p259 = scmp.lt.s32.totalorder %s258, 23
          %s260 = scalar_select %p259, %s258, 23
          %p261 = scmp.lt.s32.totalorder %s28, 0
          %s262 = scalar_select %p261, %s28, 0
          %s263 = sadd.s32 %s262, %s260
          %s264 = smul.addr %s263, 8
          %s265 = scalar_lea.vmem %s0, %s264
          %s266 = smul.u32 8, %s27
        $region36: #{tpu_custom_call.1} parent=31 // pred_fallthru
          _
        // Predicated region
        $region37: #{tpu_custom_call.1} parent=31 // pred_check
          %p267 = pneg %p82
        $region38: #{tpu_custom_call.1} parent=31 // pred_check_branch
          %269 = sbr.rel (%p267) target = $region40
        $region39: #{tpu_custom_call.1} parent=31 // pred_region
          %s270 = smul.u32 8, %s27
          %p271 = scmp.lt.s32.totalorder %s270, 23
          %s272 = scalar_select %p271, %s270, 23
          %p273 = scmp.lt.s32.totalorder %s28, 0
          %s274 = scalar_select %p273, %s28, 0
          %s275 = sadd.s32 %s274, %s272
          %s276 = smul.addr %s275, 8
          %s277 = scalar_lea.vmem %s1, %s276
          %s278 = smul.u32 8, %s27
        $region40: #{tpu_custom_call.1} parent=31 // pred_fallthru
          _
      $region32: #{tpu_custom_call.1} parent=5 // pred_fallthru
        _
      %p279 = scmp.le.s32.totalorder 1, %s20
      %p280 = scmp.lt.s32.totalorder %s20, 4
      %p281 = pnand %p279, %p280
      %p282 = pneg %p281
      // Predicated region
      $region41: #{tpu_custom_call.1} parent=5 // pred_check
        _
      $region42: #{tpu_custom_call.1} parent=5 // pred_check_branch
        %284 = sbr.rel (%p281) target = $region44
      $region43: #{tpu_custom_call.1} parent=5 // pred_region
        %s285 = ssub.s32 %s20, 1
        %s286 = smul.u32 8, %s29
        %p287 = scmp.lt.s32.totalorder %s286, 23
        %s288 = scalar_select %p287, %s286, 23
        %p289 = scmp.lt.s32.totalorder %s30, 0
        %s290 = scalar_select %p289, %s30, 0
        %s291 = sadd.s32 %s290, %s288
        %s292 = smul.addr %s291, 8
        %s293 = scalar_lea.vmem %s0, %s292
        %p294 = pneg %p60
        %p295 = pneg %p57
        %s296 = smul.u32 8, %s29
        %p297 = scmp.lt.s32.totalorder %s296, 23
        %s298 = scalar_select %p297, %s296, 23
        %p299 = scmp.lt.s32.totalorder %s30, 0
        %s300 = scalar_select %p299, %s30, 0
        %s301 = sadd.s32 %s300, %s298
        %s302 = smul.addr %s301, 8
        %s303 = scalar_lea.vmem %s1, %s302
        %p304 = pneg %p88
        %p305 = pneg %p85
        %p306 = pneg %p109
        %p307 = pneg %p106
        %p308 = pneg %p130
        %p309 = pneg %p127
        %p310 = pneg %p151
        %p311 = pneg %p148
        %p312 = pneg %p172
        %p313 = pneg %p169
        %p314 = pneg %p198
        %p315 = pneg %p195
        %s316 = sand.u32 %s185, 1
        %s317 = scalar_lea.sflag [#allocation3], %s316
        %s318 = sand.u32 %s185, 1
        %s319 = smul.addr %s318, 8
        %s320 = scalar_lea.vmem [#allocation2], %s319
        %p321 = pneg %p224
        %p322 = pneg %p221
        %s323 = sand.u32 %s211, 1
        %s324 = scalar_lea.sflag [#allocation5], %s323
        %s325 = sand.u32 %s211, 1
        %s326 = smul.addr %s325, 8
        %s327 = scalar_lea.vmem [#allocation4], %s326
        %s328 = smul.u32 8, %s29
        %p329 = scmp.lt.s32.totalorder %s328, 23
        %s330 = scalar_select %p329, %s328, 23
        %p331 = scmp.lt.s32.totalorder %s30, 0
        %s332 = scalar_select %p331, %s30, 0
        %s333 = sadd.s32 %s332, %s330
        %s334 = smul.addr %s333, 8
        %s335 = scalar_lea.vmem %s0, %s334
        %s336 = smul.u32 8, %s29
        %s337 = smul.u32 8, %s29
        %p338 = scmp.lt.s32.totalorder %s337, 23
        %s339 = scalar_select %p338, %s337, 23
        %p340 = scmp.lt.s32.totalorder %s30, 0
        %s341 = scalar_select %p340, %s30, 0
        %s342 = sadd.s32 %s341, %s339
        %s343 = smul.addr %s342, 8
        %s344 = scalar_lea.vmem %s1, %s343
        %s345 = smul.u32 8, %s29
        %p346 = scmp.eq.s32.totalorder %s30, 0
        // Predicated region
        $region45: #{tpu_custom_call.1} parent=43 // pred_check
          %p347 = pneg %p346
        $region46: #{tpu_custom_call.1} parent=43 // pred_check_branch
          %349 = sbr.rel (%p347) target = $region48
        $region47: #{tpu_custom_call.1} parent=43 // pred_region
          %vm350 = vcmask 261120
          %351 = vst.msk [vmem:[%s320] sm:$0xff] %vm350, 0.0
          %352 = vst.msk [vmem:[%s327] sm:$0xff] %vm350, 0.0
        $region48: #{tpu_custom_call.1} parent=43 // pred_fallthru
          _
        %v353 = vld [vmem:[%s335] sm:$0xff]
        %v354 = vld [vmem:[%s335 + $0x8] sm:$0xff]
        %v355 = vld [vmem:[%s335 + $0x10] sm:$0xff]
        %v356 = vld [vmem:[%s335 + $0x18] sm:$0xff]
        %v357 = vld [vmem:[%s335 + $0x20] sm:$0xff]
        %v358 = vld [vmem:[%s335 + $0x28] sm:$0xff]
        %v359 = vld [vmem:[%s335 + $0x30] sm:$0xff]
        %v360 = vld [vmem:[%s335 + $0x38] sm:$0xff]
        %v361 = vld [vmem:[%s2] sm:$0xff]
        %v362 = vld [vmem:[%s2 + $0x8] sm:$0xff]
        %v363 = vld [vmem:[%s2 + $0x10] sm:$0xff]
        %v364 = vld [vmem:[%s2 + $0x18] sm:$0xff]
        %v365 = vld [vmem:[%s2 + $0x20] sm:$0xff]
        %v366 = vld [vmem:[%s2 + $0x28] sm:$0xff]
        %v367 = vld [vmem:[%s3] sm:$0x1]
        %v369 = vperm.slane %v367, 0
        %vm371 = vcmask 392192
        %v373 = vsel %vm371, %v353, 0
        %v376 = vsel %vm371, %v354, 0
        %v379 = vsel %vm371, %v355, 0
        %v382 = vsel %vm371, %v356, 0
        %v385 = vsel %vm371, %v357, 0
        %v388 = vsel %vm371, %v358, 0
        %v391 = vsel %vm371, %v359, 0
        %v394 = vsel %vm371, %v360, 0
        %396 = vmatpush.msra.mxu0 0.0
        %397 = vmatpush.msra.mxu0 0.0
        %398 = vmatpush.msra.mxu0 0.0
        %399 = vmatpush.msra.mxu0 0.0
        %400 = vmatpush.msra.mxu0 0.0
        %401 = vmatpush.msra.mxu0 0.0
        %402 = vmatpush.msra.mxu0 0.0
        %403 = vmatpush.msra.mxu0 0.0
        %404 = vmatpush.msra.mxu0 0.0
        %405 = vmatpush.msra.mxu0 0.0
        %406 = vmatpush.msra.mxu0 %v366
        %407 = vmatpush.msra.mxu0 %v365
        %408 = vmatpush.msra.mxu0 %v364
        %409 = vmatpush.msra.mxu0 %v363
        %410 = vmatpush.msra.mxu0 %v362
        %411 = vmatpush.msra.mxu0 %v361
        %412 = vmatmul.f32.gmra.mxu0 %v373
        %v413 = vpop.f32.mrf.mxu0
        %v414 = vadd.f32 %v369, %v413
        %415 = vmatmul.f32.gmra.mxu0 %v376
        %v416 = vpop.f32.mrf.mxu0
        %v417 = vadd.f32 %v369, %v416
        %418 = vmatmul.f32.gmra.mxu0 %v379
        %v419 = vpop.f32.mrf.mxu0
        %v420 = vadd.f32 %v369, %v419
        %421 = vmatmul.f32.gmra.mxu0 %v382
        %v422 = vpop.f32.mrf.mxu0
        %v423 = vadd.f32 %v369, %v422
        %424 = vmatmul.f32.gmra.mxu0 %v385
        %v425 = vpop.f32.mrf.mxu0
        %v426 = vadd.f32 %v369, %v425
        %427 = vmatmul.f32.gmra.mxu0 %v388
        %v428 = vpop.f32.mrf.mxu0
        %v429 = vadd.f32 %v369, %v428
        %430 = vmatmul.f32.gmra.mxu0 %v391
        %v431 = vpop.f32.mrf.mxu0
        %v432 = vadd.f32 %v369, %v431
        %433 = vmatmul.f32.gmra.mxu0 %v394
        %v434 = vpop.f32.mrf.mxu0
        %v435 = vadd.f32 %v369, %v434
        %436 = vdwg.mxu0
        %v437 = vtanh.pop %v414
        %v438 = vtanh.pop %v417
        %v439 = vtanh.pop %v420
        %v440 = vtanh.pop %v423
        %v441 = vtanh.pop %v426
        %v442 = vtanh.pop %v429
        %v443 = vtanh.pop %v432
        %v444 = vtanh.pop %v435
        %v445 = vld [vmem:[%s344] sm:$0xff]
        %v446 = vld [vmem:[%s344 + $0x8] sm:$0xff]
        %v447 = vld [vmem:[%s344 + $0x10] sm:$0xff]
        %v448 = vld [vmem:[%s344 + $0x18] sm:$0xff]
        %v449 = vld [vmem:[%s344 + $0x20] sm:$0xff]
        %v450 = vld [vmem:[%s344 + $0x28] sm:$0xff]
        %v451 = vld [vmem:[%s344 + $0x30] sm:$0xff]
        %v452 = vld [vmem:[%s344 + $0x38] sm:$0xff]
        %v453 = vld [vmem:[%s320] sm:$0xff]
        %455 = vset.pattern.permute.xlu0 0
        %456 = vperm.xlu0 %455, %v445
        %v457 = vpop.permute.xlu0 %456
        %460 = vset.pattern.permute.xlu0 0
        %461 = vperm.xlu0 %460, %v446
        %v462 = vpop.permute.xlu0 %461
        %465 = vset.pattern.permute.xlu0 0
        %466 = vperm.xlu0 %465, %v447
        %v467 = vpop.permute.xlu0 %466
        %470 = vset.pattern.permute.xlu0 0
        %471 = vperm.xlu0 %470, %v448
        %v472 = vpop.permute.xlu0 %471
        %475 = vset.pattern.permute.xlu0 0
        %476 = vperm.xlu0 %475, %v449
        %v477 = vpop.permute.xlu0 %476
        %480 = vset.pattern.permute.xlu0 0
        %481 = vperm.xlu0 %480, %v450
        %v482 = vpop.permute.xlu0 %481
        %485 = vset.pattern.permute.xlu0 0
        %486 = vperm.xlu0 %485, %v451
        %v487 = vpop.permute.xlu0 %486
        %490 = vset.pattern.permute.xlu0 0
        %491 = vperm.xlu0 %490, %v452
        %v492 = vpop.permute.xlu0 %491
        %v494 = vmul.f32 %v437, %v457
        %v495 = vmul.f32 %v438, %v462
        %v496 = vmul.f32 %v439, %v467
        %v497 = vmul.f32 %v440, %v472
        %v498 = vmul.f32 %v441, %v477
        %v499 = vmul.f32 %v442, %v482
        %v500 = vmul.f32 %v443, %v487
        %v501 = vmul.f32 %v444, %v492
        %vm502 = vcmask 261120
        %v503 = vsel %vm502, %v494, 0.0
        %v504 = vrot.slane %v503, 4
        %v505 = vadd.f32 %v503, %v504
        %v506 = vrot.slane %v505, 2
        %v507 = vadd.f32 %v505, %v506
        %v508 = vrot.slane %v507, 1
        %v509 = vadd.f32 %v507, %v508
        %v510 = vsel %vm502, %v495, 0.0
        %v511 = vrot.slane %v510, 4
        %v512 = vadd.f32 %v510, %v511
        %v513 = vrot.slane %v512, 2
        %v514 = vadd.f32 %v512, %v513
        %v515 = vrot.slane %v514, 1
        %v516 = vadd.f32 %v514, %v515
        %v517 = vsel %vm502, %v496, 0.0
        %v518 = vrot.slane %v517, 4
        %v519 = vadd.f32 %v517, %v518
        %v520 = vrot.slane %v519, 2
        %v521 = vadd.f32 %v519, %v520
        %v522 = vrot.slane %v521, 1
        %v523 = vadd.f32 %v521, %v522
        %v524 = vsel %vm502, %v497, 0.0
        %v525 = vrot.slane %v524, 4
        %v526 = vadd.f32 %v524, %v525
        %v527 = vrot.slane %v526, 2
        %v528 = vadd.f32 %v526, %v527
        %v529 = vrot.slane %v528, 1
        %v530 = vadd.f32 %v528, %v529
        %v531 = vsel %vm502, %v498, 0.0
        %v532 = vrot.slane %v531, 4
        %v533 = vadd.f32 %v531, %v532
        %v534 = vrot.slane %v533, 2
        %v535 = vadd.f32 %v533, %v534
        %v536 = vrot.slane %v535, 1
        %v537 = vadd.f32 %v535, %v536
        %v538 = vsel %vm502, %v499, 0.0
        %v539 = vrot.slane %v538, 4
        %v540 = vadd.f32 %v538, %v539
        %v541 = vrot.slane %v540, 2
        %v542 = vadd.f32 %v540, %v541
        %v543 = vrot.slane %v542, 1
        %v544 = vadd.f32 %v542, %v543
        %v545 = vsel %vm502, %v500, 0.0
        %v546 = vrot.slane %v545, 4
        %v547 = vadd.f32 %v545, %v546
        %v548 = vrot.slane %v547, 2
        %v549 = vadd.f32 %v547, %v548
        %v550 = vrot.slane %v549, 1
        %v551 = vadd.f32 %v549, %v550
        %v552 = vsel %vm502, %v501, 0.0
        %v553 = vrot.slane %v552, 4
        %v554 = vadd.f32 %v552, %v553
        %v555 = vrot.slane %v554, 2
        %v556 = vadd.f32 %v554, %v555
        %v557 = vrot.slane %v556, 1
        %v558 = vadd.f32 %v556, %v557
        %vm567 = vcmask 1041409
        %v568 = vsel %vm567, %v516, %v509
        %vm569 = vcmask 1042434
        %v570 = vsel %vm569, %v523, %v568
        %vm571 = vcmask 1043459
        %v572 = vsel %vm571, %v530, %v570
        %vm573 = vcmask 1044484
        %v574 = vsel %vm573, %v537, %v572
        %vm575 = vcmask 1045509
        %v576 = vsel %vm575, %v544, %v574
        %vm577 = vcmask 1046534
        %v578 = vsel %vm577, %v551, %v576
        %vm579 = vcmask 1047559
        %v580 = vsel %vm579, %v558, %v578
        %v582 = vadd.f32 %v453, %v580
        %583 = vst.msk [vmem:[%s320] sm:$0xff] %vm502, %v582
        %p584 = scmp.ge.s32.totalorder %s29, 2
        // Predicated region
        $region49: #{tpu_custom_call.1} parent=43 // pred_check
          %p585 = pneg %p584
        $region50: #{tpu_custom_call.1} parent=43 // pred_check_branch
          %587 = sbr.rel (%p585) target = $region52
        $region51: #{tpu_custom_call.1} parent=43 // pred_region
          %v588 = vmul.f32 %v437, %v437
          %v589 = vmul.f32 %v438, %v438
          %v590 = vmul.f32 %v439, %v439
          %v591 = vmul.f32 %v440, %v440
          %v592 = vmul.f32 %v441, %v441
          %v593 = vmul.f32 %v442, %v442
          %v594 = vmul.f32 %v443, %v443
          %v595 = vmul.f32 %v444, %v444
          %v596 = vsub.f32 1.0, %v588
          %v597 = vsub.f32 1.0, %v589
          %v598 = vsub.f32 1.0, %v590
          %v599 = vsub.f32 1.0, %v591
          %v600 = vsub.f32 1.0, %v592
          %v601 = vsub.f32 1.0, %v593
          %v602 = vsub.f32 1.0, %v594
          %v603 = vsub.f32 1.0, %v595
          %v604 = vld [vmem:[%s4] sm:$0x1]
          %v606 = vperm.slane %v604, 0
          %v608 = vmul.f32 %v596, %v606
          %v609 = vmul.f32 %v597, %v606
          %v610 = vmul.f32 %v598, %v606
          %v611 = vmul.f32 %v599, %v606
          %v612 = vmul.f32 %v600, %v606
          %v613 = vmul.f32 %v601, %v606
          %v614 = vmul.f32 %v602, %v606
          %v615 = vmul.f32 %v603, %v606
          %v616 = vld [vmem:[%s5] sm:$0xff]
          %v617 = vld [vmem:[%s5 + $0x8] sm:$0xff]
          %v618 = vld [vmem:[%s5 + $0x10] sm:$0xff]
          %v619 = vld [vmem:[%s5 + $0x18] sm:$0xff]
          %v621 = vsel %vm502, %v608, 0
          %v624 = vsel %vm502, %v609, 0
          %v627 = vsel %vm502, %v610, 0
          %v630 = vsel %vm502, %v611, 0
          %v633 = vsel %vm502, %v612, 0
          %v636 = vsel %vm502, %v613, 0
          %v639 = vsel %vm502, %v614, 0
          %v642 = vsel %vm502, %v615, 0
          %644 = vmatpush.msra.mxu0 0.0
          %645 = vmatpush.msra.mxu0 0.0
          %646 = vmatpush.msra.mxu0 0.0
          %647 = vmatpush.msra.mxu0 0.0
          %648 = vmatpush.msra.mxu0 0.0
          %649 = vmatpush.msra.mxu0 0.0
          %650 = vmatpush.msra.mxu0 0.0
          %651 = vmatpush.msra.mxu0 0.0
          %652 = vmatpush.msra.mxu0 0.0
          %653 = vmatpush.msra.mxu0 0.0
          %654 = vmatpush.msra.mxu0 0.0
          %655 = vmatpush.msra.mxu0 0.0
          %656 = vmatpush.msra.mxu0 %v619
          %657 = vmatpush.msra.mxu0 %v618
          %658 = vmatpush.msra.mxu0 %v617
          %659 = vmatpush.msra.mxu0 %v616
          %660 = vmatmul.f32.gmra.mxu0 %v621
          %v661 = vpop.f32.mrf.mxu0
          %v662 = vadd.f32 0.0, %v661
          %663 = vmatmul.f32.gmra.mxu0 %v624
          %v664 = vpop.f32.mrf.mxu0
          %v665 = vadd.f32 0.0, %v664
          %666 = vmatmul.f32.gmra.mxu0 %v627
          %v667 = vpop.f32.mrf.mxu0
          %v668 = vadd.f32 0.0, %v667
          %669 = vmatmul.f32.gmra.mxu0 %v630
          %v670 = vpop.f32.mrf.mxu0
          %v671 = vadd.f32 0.0, %v670
          %672 = vmatmul.f32.gmra.mxu0 %v633
          %v673 = vpop.f32.mrf.mxu0
          %v674 = vadd.f32 0.0, %v673
          %675 = vmatmul.f32.gmra.mxu0 %v636
          %v676 = vpop.f32.mrf.mxu0
          %v677 = vadd.f32 0.0, %v676
          %678 = vmatmul.f32.gmra.mxu0 %v639
          %v679 = vpop.f32.mrf.mxu0
          %v680 = vadd.f32 0.0, %v679
          %681 = vmatmul.f32.gmra.mxu0 %v642
          %v682 = vpop.f32.mrf.mxu0
          %v683 = vadd.f32 0.0, %v682
          %684 = vdwg.mxu0
          %v685 = vmul.f32 %v608, %v662
          %v686 = vmul.f32 %v609, %v665
          %v687 = vmul.f32 %v610, %v668
          %v688 = vmul.f32 %v611, %v671
          %v689 = vmul.f32 %v612, %v674
          %v690 = vmul.f32 %v613, %v677
          %v691 = vmul.f32 %v614, %v680
          %v692 = vmul.f32 %v615, %v683
          %v693 = vld [vmem:[%s327] sm:$0xff]
          %v694 = vmul.f32 %v445, %v445
          %v695 = vmul.f32 %v446, %v446
          %v696 = vmul.f32 %v447, %v447
          %v697 = vmul.f32 %v448, %v448
          %v698 = vmul.f32 %v449, %v449
          %v699 = vmul.f32 %v450, %v450
          %v700 = vmul.f32 %v451, %v451
          %v701 = vmul.f32 %v452, %v452
          %703 = vset.pattern.permute.xlu0 0
          %704 = vperm.xlu0 %703, %v694
          %v705 = vpop.permute.xlu0 %704
          %708 = vset.pattern.permute.xlu0 0
          %709 = vperm.xlu0 %708, %v695
          %v710 = vpop.permute.xlu0 %709
          %713 = vset.pattern.permute.xlu0 0
          %714 = vperm.xlu0 %713, %v696
          %v715 = vpop.permute.xlu0 %714
          %718 = vset.pattern.permute.xlu0 0
          %719 = vperm.xlu0 %718, %v697
          %v720 = vpop.permute.xlu0 %719
          %723 = vset.pattern.permute.xlu0 0
          %724 = vperm.xlu0 %723, %v698
          %v725 = vpop.permute.xlu0 %724
          %728 = vset.pattern.permute.xlu0 0
          %729 = vperm.xlu0 %728, %v699
          %v730 = vpop.permute.xlu0 %729
          %733 = vset.pattern.permute.xlu0 0
          %734 = vperm.xlu0 %733, %v700
          %v735 = vpop.permute.xlu0 %734
          %738 = vset.pattern.permute.xlu0 0
          %739 = vperm.xlu0 %738, %v701
          %v740 = vpop.permute.xlu0 %739
          %v742 = vmul.f32 %v685, %v705
          %v743 = vmul.f32 %v686, %v710
          %v744 = vmul.f32 %v687, %v715
          %v745 = vmul.f32 %v688, %v720
          %v746 = vmul.f32 %v689, %v725
          %v747 = vmul.f32 %v690, %v730
          %v748 = vmul.f32 %v691, %v735
          %v749 = vmul.f32 %v692, %v740
          %v750 = vsel %vm502, %v742, 0.0
          %v751 = vrot.slane %v750, 4
          %v752 = vadd.f32 %v750, %v751
          %v753 = vrot.slane %v752, 2
          %v754 = vadd.f32 %v752, %v753
          %v755 = vrot.slane %v754, 1
          %v756 = vadd.f32 %v754, %v755
          %v757 = vsel %vm502, %v743, 0.0
          %v758 = vrot.slane %v757, 4
          %v759 = vadd.f32 %v757, %v758
          %v760 = vrot.slane %v759, 2
          %v761 = vadd.f32 %v759, %v760
          %v762 = vrot.slane %v761, 1
          %v763 = vadd.f32 %v761, %v762
          %v764 = vsel %vm502, %v744, 0.0
          %v765 = vrot.slane %v764, 4
          %v766 = vadd.f32 %v764, %v765
          %v767 = vrot.slane %v766, 2
          %v768 = vadd.f32 %v766, %v767
          %v769 = vrot.slane %v768, 1
          %v770 = vadd.f32 %v768, %v769
          %v771 = vsel %vm502, %v745, 0.0
          %v772 = vrot.slane %v771, 4
          %v773 = vadd.f32 %v771, %v772
          %v774 = vrot.slane %v773, 2
          %v775 = vadd.f32 %v773, %v774
          %v776 = vrot.slane %v775, 1
          %v777 = vadd.f32 %v775, %v776
          %v778 = vsel %vm502, %v746, 0.0
          %v779 = vrot.slane %v778, 4
          %v780 = vadd.f32 %v778, %v779
          %v781 = vrot.slane %v780, 2
          %v782 = vadd.f32 %v780, %v781
          %v783 = vrot.slane %v782, 1
          %v784 = vadd.f32 %v782, %v783
          %v785 = vsel %vm502, %v747, 0.0
          %v786 = vrot.slane %v785, 4
          %v787 = vadd.f32 %v785, %v786
          %v788 = vrot.slane %v787, 2
          %v789 = vadd.f32 %v787, %v788
          %v790 = vrot.slane %v789, 1
          %v791 = vadd.f32 %v789, %v790
          %v792 = vsel %vm502, %v748, 0.0
          %v793 = vrot.slane %v792, 4
          %v794 = vadd.f32 %v792, %v793
          %v795 = vrot.slane %v794, 2
          %v796 = vadd.f32 %v794, %v795
          %v797 = vrot.slane %v796, 1
          %v798 = vadd.f32 %v796, %v797
          %v799 = vsel %vm502, %v749, 0.0
          %v800 = vrot.slane %v799, 4
          %v801 = vadd.f32 %v799, %v800
          %v802 = vrot.slane %v801, 2
          %v803 = vadd.f32 %v801, %v802
          %v804 = vrot.slane %v803, 1
          %v805 = vadd.f32 %v803, %v804
          %v814 = vsel %vm567, %v763, %v756
          %v815 = vsel %vm569, %v770, %v814
          %v816 = vsel %vm571, %v777, %v815
          %v817 = vsel %vm573, %v784, %v816
          %v818 = vsel %vm575, %v791, %v817
          %v819 = vsel %vm577, %v798, %v818
          %v820 = vsel %vm579, %v805, %v819
          %v822 = vadd.f32 %v693, %v820
          %823 = vst.msk [vmem:[%s327] sm:$0xff] %vm502, %v822
        $region52: #{tpu_custom_call.1} parent=43 // pred_fallthru
          _
        %s824 = sand.u32 %s185, 1
        %s825 = scalar_lea.sflag [#allocation3], %s824
        %s826 = sand.u32 %s185, 1
        %s827 = smul.addr %s826, 8
        %s828 = scalar_lea.vmem [#allocation2], %s827
        %s829 = sand.u32 %s211, 1
        %s830 = scalar_lea.sflag [#allocation5], %s829
        %s831 = sand.u32 %s211, 1
        %s832 = smul.addr %s831, 8
        %s833 = scalar_lea.vmem [#allocation4], %s832
        // Predicated region
        $region53: #{tpu_custom_call.1} parent=43 // pred_check
          %p834 = pneg %p195
        $region54: #{tpu_custom_call.1} parent=43 // pred_check_branch
          %836 = sbr.rel (%p834) target = $region56
        $region55: #{tpu_custom_call.1} parent=43 // pred_region
          %838 = vsyncadd %s825, 0
          %s839 = smul.addr %s29, 8
          %s840 = scalar_lea.hbm %s6, %s839
          %s842 = sshll.u32 %s828, 4
          %s843 = int_to_ptr.vmem [resolvable:$true] %s842
          %s844 = sshll.u32 %s840, 4
          %s845 = int_to_ptr.hbm [resolvable:$true] %s844
          %847 = dma.vmem_to_hbm [thread:$0]  %s843, 128, %s845, %s825
        $region56: #{tpu_custom_call.1} parent=43 // pred_fallthru
          _
        // Predicated region
        $region57: #{tpu_custom_call.1} parent=43 // pred_check
          %p848 = pneg %p221
        $region58: #{tpu_custom_call.1} parent=43 // pred_check_branch
          %850 = sbr.rel (%p848) target = $region60
        $region59: #{tpu_custom_call.1} parent=43 // pred_region
          %852 = vsyncadd %s830, 0
          %s853 = smul.addr %s29, 8
          %s854 = scalar_lea.hbm %s7, %s853
          %s856 = sshll.u32 %s833, 4
          %s857 = int_to_ptr.vmem [resolvable:$true] %s856
          %s858 = sshll.u32 %s854, 4
          %s859 = int_to_ptr.hbm [resolvable:$true] %s858
          %861 = dma.vmem_to_hbm [thread:$0]  %s857, 128, %s859, %s830
        $region60: #{tpu_custom_call.1} parent=43 // pred_fallthru
          _
      $region44: #{tpu_custom_call.1} parent=5 // pred_fallthru
        _
      %p862 = scmp.le.s32.totalorder 2, %s20
      // Predicated region
      $region61: #{tpu_custom_call.1} parent=5 // pred_check
        %p863 = pneg %p862
      $region62: #{tpu_custom_call.1} parent=5 // pred_check_branch
        %865 = sbr.rel (%p863) target = $region64
      $region63: #{tpu_custom_call.1} parent=5 // pred_region
        %s866 = ssub.s32 %s20, 2
        // Predicated region
        $region65: #{tpu_custom_call.1} parent=63 // pred_check
          %p867 = pneg %p201
        $region66: #{tpu_custom_call.1} parent=63 // pred_check_branch
          %869 = sbr.rel (%p867) target = $region68
        $region67: #{tpu_custom_call.1} parent=63 // pred_region
          %s870 = sand.u32 %s186, 1
          %s871 = scalar_lea.sflag [#allocation3], %s870
          %s872 = sand.u32 %s186, 1
          %s873 = smul.addr %s872, 8
          %s874 = scalar_lea.vmem [#allocation2], %s873
          %876 = dma.done %s871, 128
        $region68: #{tpu_custom_call.1} parent=63 // pred_fallthru
          _
        // Predicated region
        $region69: #{tpu_custom_call.1} parent=63 // pred_check
          %p877 = pneg %p227
        $region70: #{tpu_custom_call.1} parent=63 // pred_check_branch
          %879 = sbr.rel (%p877) target = $region72
        $region71: #{tpu_custom_call.1} parent=63 // pred_region
          %s880 = sand.u32 %s212, 1
          %s881 = scalar_lea.sflag [#allocation5], %s880
          %s882 = sand.u32 %s212, 1
          %s883 = smul.addr %s882, 8
          %s884 = scalar_lea.vmem [#allocation4], %s883
          %886 = dma.done %s881, 128
        $region72: #{tpu_custom_call.1} parent=63 // pred_fallthru
          _
      $region64: #{tpu_custom_call.1} parent=5 // pred_fallthru
        _
    $region6: #{tpu_custom_call.1} parent=1 // loop_footer
      %s24 = sadd.s32 1, %s20
    $region7: #{tpu_custom_call.1} parent=1 // loop_footer_branch
      %19 = sbr.rel target = $region3
    $region8: #{tpu_custom_call.1} parent=1 // loop_exit
      _
    %887 = vsyncpa [#allocation3], 1
    %s888 = scalar_lea.sflag [#allocation3], 1
    %889 = vsyncpa %s888, 1
    %890 = vsyncpa [#allocation5], 1
    %s891 = scalar_lea.sflag [#allocation5], 1
    %892 = vsyncpa %s891, 1

</llo_original>
